<compile_context>
chip_gen: v7x
topology: tpu7x:2x2x1
jax: 0.10.0
libtpu: 0.0.40
codegen_flags: <defaults>
</compile_context>

<pallas_src>
import functools

import jax
import jax.numpy as jnp
from jax.experimental import pallas as pl
from jax.experimental.pallas import tpu as pltpu


_LANES = 128


def _cdiv(a, b):
    return -(-a // b)


def _round_up(a, b):
    return _cdiv(a, b) * b


def _sum_kernel(x_ref, out_ref, acc_ref, *, tile_rows, blocks_per_chunk,
                total_elems, need_mask):
    c = pl.program_id(0)   # parallel chunk axis (megacore / v7x dual-TC)
    i = pl.program_id(1)   # sequential reduction axis over row tiles

    @pl.when(i == 0)
    def _init():
        acc_ref[...] = jnp.zeros_like(acc_ref)

    x = x_ref[...].astype(jnp.float32)
    if need_mask:
        # Mask elements whose *logical* flat index is >= total_elems.  This
        # covers: lane remainder in the last row, row remainder in the last
        # tile, and fully-out-of-range (clamped duplicate) tiles.
        logical_block = c * blocks_per_chunk + i
        base_row = logical_block * tile_rows
        row_ids = jax.lax.broadcasted_iota(jnp.int32, x.shape, 0) + base_row
        col_ids = jax.lax.broadcasted_iota(jnp.int32, x.shape, 1)
        full_rows = total_elems // _LANES
        rem = total_elems % _LANES
        mask = (row_ids < full_rows) | ((row_ids == full_rows) & (col_ids < rem))
        x = jnp.where(mask, x, 0.0)

    # Hot loop: pure VPU elementwise accumulate (no XLU reduce, no SMEM dep).
    acc_ref[...] += x

    @pl.when(i == pl.num_programs(1) - 1)
    def _finalize():
        # Single cross-lane/sublane reduce per chunk, once at the end.
        out_ref[...] = jnp.broadcast_to(jnp.sum(acc_ref[...]), out_ref.shape)


def pallas_mean(x):
    """Full-tensor mean of x via a Pallas grid reduction. Returns a scalar."""
    total = int(x.size)
    flat = jnp.reshape(x, (-1,))
    rows = _cdiv(total, _LANES)
    padded_len = rows * _LANES
    if padded_len != total:
        # TODO(synk): only the lane remainder (<128 elems) forces a pad so the
        # flat buffer can be viewed as [rows, 128]; this copies x once.  Not
        # hit for typical activation shapes where total % 128 == 0.
        flat = jnp.pad(flat, (0, padded_len - total))
    slab = jnp.reshape(flat, (rows, _LANES))  # zero-copy in the common case

    # Tile sizing: multiple of 16 sublanes (safe for f32 and bf16), capped at
    # 1024 rows -> <=512 KiB/input tile, ~1.5 MiB total with double-buffering
    # and the accumulator; fits every generation incl. v7x's 64 MiB VMEM.
    tile_rows = min(1024, _round_up(rows, 16))
    total_blocks = _cdiv(rows, tile_rows)
    num_chunks = 2 if total_blocks >= 2 else 1  # v7x: one chunk per TensorCore
    blocks_per_chunk = _cdiv(total_blocks, num_chunks)
    grid = (num_chunks, blocks_per_chunk)
    need_mask = (num_chunks * blocks_per_chunk * tile_rows * _LANES) != total

    if num_chunks * blocks_per_chunk == total_blocks:
        in_index_map = lambda c, i: (c * blocks_per_chunk + i, 0)
    else:
        # Clamp to the last real block; its (valid) data is zeroed by the
        # logical-index mask inside the kernel, so no double counting.
        in_index_map = lambda c, i: (
            jnp.minimum(c * blocks_per_chunk + i, total_blocks - 1), 0)

    kernel = functools.partial(
        _sum_kernel,
        tile_rows=tile_rows,
        blocks_per_chunk=blocks_per_chunk,
        total_elems=total,
        need_mask=need_mask,
    )

    partials = pl.pallas_call(
        kernel,
        out_shape=jax.ShapeDtypeStruct((num_chunks, 8, _LANES), jnp.float32),
        grid_spec=pltpu.PrefetchScalarGridSpec(
            num_scalar_prefetch=0,
            grid=grid,
            in_specs=[pl.BlockSpec((tile_rows, _LANES), in_index_map)],
            out_specs=pl.BlockSpec((1, 8, _LANES), lambda c, i: (c, 0, 0)),
            scratch_shapes=[pltpu.VMEM((tile_rows, _LANES), jnp.float32)],
        ),
        compiler_params=pltpu.CompilerParams(
            dimension_semantics=("parallel", "arbitrary")),
        cost_estimate=pl.CostEstimate(
            flops=total,
            transcendentals=0,
            bytes_accessed=total * x.dtype.itemsize + num_chunks * 8 * _LANES * 4),
    )(slab)

    # Tiny finish: one partial sum per chunk (broadcast over its tile; read
    # element [0, 0]), combined and normalized outside the kernel.
    return jnp.sum(partials[:, 0, 0]) / jnp.float32(total)


class LogValue:
    """JAX/Pallas mirror of lizrd.support.metrics.LogValue."""

    def __init__(self, name, aggregate=pallas_mean, subname=None):
        if subname is None:
            subname = "val_" + aggregate.__name__
        self.name = name
        self.subname = subname
        self.aggregate = aggregate
        self.last_value = None
        # TODO(synk): MetricWriter / TensorBoard plumbing has no Pallas
        # equivalent; logging is modeled as storing the scalar on the object.

    def add_scalar(self, value):
        self.last_value = value

    def __call__(self, x):
        mean_x = self.aggregate(x)
        self.add_scalar(mean_x)
        return x  # passthrough, exactly like the PyTorch module


if __name__ == "__main__":
    key = jax.random.PRNGKey(0)
    x = jax.random.normal(key, (2, 4, 16, 16), dtype=jnp.float32)  # NCHW

    logger = LogValue("test_metric")
    out = logger(x)

    out = jax.block_until_ready(out)
    mean_val = jax.block_until_ready(logger.last_value)

    # Sanity check against plain-JAX reference.
    ref_mean = jnp.mean(x)
    assert out.shape == x.shape and out.dtype == x.dtype
    assert jnp.allclose(out, x)
    assert jnp.allclose(mean_val, ref_mean, atol=1e-6, rtol=1e-5), (
        mean_val, ref_mean)

    print("KERNEL_OK")
</pallas_src>

<mosaic_0001>
module attributes {stable_mosaic.version = 11 : i64} {
  func.func @_sum_kernel(%arg0: i32, %arg1: i32, %arg2: memref<16x128xf32, #tpu.memory_space<vmem>>, %arg3: memref<1x8x128xf32, #tpu.memory_space<vmem>>, %arg4: memref<16x128xf32, #tpu.memory_space<vmem>>) attributes {dimension_semantics = [#tpu.dimension_semantics<parallel>, #tpu.dimension_semantics<arbitrary>], iteration_bounds = array<i64: 1, 1>, scalar_prefetch = 0 : i64, scratch_operands = 1 : i64, tpu.core_type = #tpu.core_type<tc>, window_params = [{transform_indices = @transform_0, window_bounds = array<i64: 16, 128>}, {transform_indices = @transform_1, window_bounds = array<i64: 1, 8, 128>}]} {
    %c0_i32 = arith.constant 0 : i32
    %0 = arith.cmpi eq, %arg1, %c0_i32 : i32
    %1 = arith.extui %0 : i1 to i32
    %c0_i32_0 = arith.constant 0 : i32
    %2 = arith.cmpi ne, %1, %c0_i32_0 : i32
    scf.if %2 {
      %cst = arith.constant 0.000000e+00 : f32
      %10 = vector.broadcast %cst : f32 to vector<16x128xf32>
      %c0_8 = arith.constant 0 : index
      %c0_9 = arith.constant 0 : index
      %11 = vector.load %arg4[%c0_8, %c0_9] : memref<16x128xf32, #tpu.memory_space<vmem>>, vector<16x128xf32>
      tpu.vector_store %arg4[%c0_8, %c0_9], %10 {strides = array<i32>} : memref<16x128xf32, #tpu.memory_space<vmem>>, vector<16x128xf32>,
    } else {
    }
    %c0 = arith.constant 0 : index
    %c0_1 = arith.constant 0 : index
    %3 = vector.load %arg2[%c0, %c0_1] : memref<16x128xf32, #tpu.memory_space<vmem>>, vector<16x128xf32>
    %c0_2 = arith.constant 0 : index
    %c0_3 = arith.constant 0 : index
    %4 = vector.load %arg4[%c0_2, %c0_3] : memref<16x128xf32, #tpu.memory_space<vmem>>, vector<16x128xf32>
    %5 = arith.addf %4, %3 : vector<16x128xf32>
    %c0_4 = arith.constant 0 : index
    %c0_5 = arith.constant 0 : index
    %6 = vector.load %arg4[%c0_4, %c0_5] : memref<16x128xf32, #tpu.memory_space<vmem>>, vector<16x128xf32>
    tpu.vector_store %arg4[%c0_4, %c0_5], %5 {strides = array<i32>} : memref<16x128xf32, #tpu.memory_space<vmem>>, vector<16x128xf32>,
    %c0_i32_6 = arith.constant 0 : i32
    %7 = arith.cmpi eq, %arg1, %c0_i32_6 : i32
    %8 = arith.extui %7 : i1 to i32
    %c0_i32_7 = arith.constant 0 : i32
    %9 = arith.cmpi ne, %8, %c0_i32_7 : i32
    scf.if %9 {
      %c0_8 = arith.constant 0 : index
      %c0_9 = arith.constant 0 : index
      %10 = vector.load %arg4[%c0_8, %c0_9] : memref<16x128xf32, #tpu.memory_space<vmem>>, vector<16x128xf32>
      %11 = vector.shape_cast %10 : vector<16x128xf32> to vector<1x16x128xf32>
      %cst = arith.constant dense<0.000000e+00> : vector<1xf32>
      %12 = vector.multi_reduction <add>, %11, %cst [1, 2] : vector<1x16x128xf32> to vector<1xf32>
      %13 = vector.shape_cast %12 : vector<1xf32> to vector<1x1x1xf32>
      %14 = vector.extract %13[0, 0, 0] : f32 from vector<1x1x1xf32>
      %15 = vector.broadcast %14 : f32 to vector<1x8x128xf32>
      %c0_10 = arith.constant 0 : index
      %c0_11 = arith.constant 0 : index
      %c0_12 = arith.constant 0 : index
      %16 = vector.load %arg3[%c0_10, %c0_11, %c0_12] : memref<1x8x128xf32, #tpu.memory_space<vmem>>, vector<1x8x128xf32>
      tpu.vector_store %arg3[%c0_10, %c0_11, %c0_12], %15 {strides = array<i32>} : memref<1x8x128xf32, #tpu.memory_space<vmem>>, vector<1x8x128xf32>,
    } else {
    }
    return
  }
  func.func @transform_0(%arg0: i32, %arg1: i32) -> (i32, i32) {
    %c1_i32 = arith.constant 1 : i32
    %0 = arith.muli %arg0, %c1_i32 : i32
    %1 = arith.addi %0, %arg1 : i32
    %c0_i32 = arith.constant 0 : i32
    %c0_i32_0 = arith.constant 0 : i32
    return %1, %c0_i32 : i32, i32
  }
  func.func @transform_1(%arg0: i32, %arg1: i32) -> (i32, i32, i32) {
    %c0_i32 = arith.constant 0 : i32
    %c0_i32_0 = arith.constant 0 : i32
    %c0_i32_1 = arith.constant 0 : i32
    return %arg0, %c0_i32, %c0_i32_0 : i32, i32, i32
  }
}

</mosaic_0001>

<llo_original>
// kernel: tpu_custom_call.1
$region0: #{tpu_custom_call.1}
  #allocation0 [shape = 'u32[]', space=smem, size = 0x4, offset = 0x4, fixed_abs, tag = 'smem constant byte address 0x4 - core index']
  #allocation1 [shape = 'u32[144,128]{1,0:T(1,128)}', space=vmem, size = 0x12000, scoped, tag = 'internal scratch']
  #allocation2 [shape = 'f32[16,128]{1,0:T(8,128)}', space=vmem, size = 0x2000, scoped, tag = 'scratch operand']
  %s0 = inlined_call_operand.hbm [shape: f32[16,128], index: 0, kind: input, shape index: {}]
  %s1 = inlined_call_operand.hbm [shape: f32[1,8,128], index: 1, kind: output, shape index: {}]
  %s2 = sld [smem:[#allocation0]]
  $region26: #{tpu_custom_call.1} parent=0
    _
  %s4 = ssub.s32 1, %s2
  %s5 = scalar_select 0, %s4, %s2
  $region1: #{tpu_custom_call.1} parent=0
    #allocation3 [shape = 'u8[8192]{0}', space=vmem, size = 0x2000, scoped, tag = 'input window, operand 0, single buffered']
    #allocation4 [shape = 's32[1]{0}', space=sflag, size = 0x4, scoped, tag = 'scoped memory for tpu_custom_call.1']
    #allocation5 [shape = 's32[1]{0}', space=sflag, size = 0x4, scoped, tag = 'scoped memory for tpu_custom_call.1']
    #allocation6 [shape = 'u8[4096]{0}', space=vmem, size = 0x1000, scoped, tag = 'output window, operand 0, single buffered']
    %6 = vsyncpa [#allocation4], 0
    %7 = vsyncpa [#allocation5], 0
    // Predicated region
    $region2: #{tpu_custom_call.1} parent=1 // pred_check
      _
    $region3: #{tpu_custom_call.1} parent=1 // pred_check_branch
      %9 = sbr.rel (0) target = $region5
    $region4: #{tpu_custom_call.1} parent=1 // pred_region
      %s10 = sadd.s32 0, 0
      %s11 = smul.u32 2, %s10
      %s13 = ssub.s32 256, 256
      %14 = vsyncadd [#allocation4], %s13
      %s15 = smul.addr %s11, 128
      %s16 = scalar_lea.hbm %s0, %s15
      %s17 = sshll.u32 [#allocation3], 4
      %s18 = int_to_ptr.vmem [resolvable:$true] %s17
      %23 = dma.hbm_to_vmem [thread:$0]  %s16, 256, %s18, [#allocation4], 128, 128, 8
    $region5: #{tpu_custom_call.1} parent=1 // pred_fallthru
      _
    // Predicated region
    $region6: #{tpu_custom_call.1} parent=1 // pred_check
      _
    $region7: #{tpu_custom_call.1} parent=1 // pred_check_branch
      %25 = sbr.rel (0) target = $region9
    $region8: #{tpu_custom_call.1} parent=1 // pred_region
      %26 = dma.done [#allocation4], 256
    $region9: #{tpu_custom_call.1} parent=1 // pred_fallthru
      _
    %s27 = sadd.s32 0, 0
    %s28 = smul.u32 2, %s27
    %p29 = scmp.eq.s32.totalorder 0, 0
    // Predicated region
    $region10: #{tpu_custom_call.1} parent=1 // pred_check
      %p30 = pneg %p29
    $region11: #{tpu_custom_call.1} parent=1 // pred_check_branch
      %32 = sbr.rel (%p30) target = $region13
    $region12: #{tpu_custom_call.1} parent=1 // pred_region
      %33 = vst [vmem:[#allocation2] sm:$0xff] 0.0
      %34 = vst [vmem:[#allocation2 + $0x8] sm:$0xff] 0.0
    $region13: #{tpu_custom_call.1} parent=1 // pred_fallthru
      _
    %v35 = vld [vmem:[#allocation3] sm:$0xff]
    %v36 = vld [vmem:[#allocation3 + $0x8] sm:$0xff]
    %v37 = vld [vmem:[#allocation2] sm:$0xff]
    %v38 = vld [vmem:[#allocation2 + $0x8] sm:$0xff]
    %v39 = vadd.f32 %v37, %v35
    %v40 = vadd.f32 %v38, %v36
    %41 = vst [vmem:[#allocation2] sm:$0xff] %v39
    %42 = vst [vmem:[#allocation2 + $0x8] sm:$0xff] %v40
    // Predicated region
    $region14: #{tpu_custom_call.1} parent=1 // pred_check
      %p43 = pneg %p29
    $region15: #{tpu_custom_call.1} parent=1 // pred_check_branch
      %45 = sbr.rel (%p43) target = $region17
    $region16: #{tpu_custom_call.1} parent=1 // pred_region
      %v46 = vld [vmem:[#allocation2] sm:$0xff]
      %v47 = vld [vmem:[#allocation2 + $0x8] sm:$0xff]
      %v48 = vadd.f32 %v46, %v47
      %49 = vadd.xlane.f32.xlu0 %v48
      %v50 = vpop.xlane.xlu0 %49
      %v51 = vrot.slane %v50, 4
      %v52 = vadd.f32 %v50, %v51
      %v53 = vrot.slane %v52, 2
      %v54 = vadd.f32 %v52, %v53
      %v55 = vrot.slane %v54, 1
      %v56 = vadd.f32 %v54, %v55
      %s57 = vtos %v56
      %v58 = vstv %s57
      %59 = vst [vmem:[#allocation6] sm:$0xff] %v58
    $region17: #{tpu_custom_call.1} parent=1 // pred_fallthru
      _
    // Predicated region
    $region18: #{tpu_custom_call.1} parent=1 // pred_check
      _
    $region19: #{tpu_custom_call.1} parent=1 // pred_check_branch
      %61 = sbr.rel (0) target = $region21
    $region20: #{tpu_custom_call.1} parent=1 // pred_region
      %s63 = ssub.s32 128, 128
      %64 = vsyncadd [#allocation5], %s63
      %s66 = sshll.u32 [#allocation6], 4
      %s67 = int_to_ptr.vmem [resolvable:$true] %s66
      %69 = dma.vmem_to_hbm [thread:$0]  %s67, 128, %s1, [#allocation5]
    $region21: #{tpu_custom_call.1} parent=1 // pred_fallthru
      _
    // Predicated region
    $region22: #{tpu_custom_call.1} parent=1 // pred_check
      _
    $region23: #{tpu_custom_call.1} parent=1 // pred_check_branch
      %71 = sbr.rel (0) target = $region25
    $region24: #{tpu_custom_call.1} parent=1 // pred_region
      %72 = dma.done [#allocation5], 128
    $region25: #{tpu_custom_call.1} parent=1 // pred_fallthru
      _
    %73 = vsyncpa [#allocation4], 1
    %74 = vsyncpa [#allocation5], 1

</llo_original>
